<compile_context>
chip_gen: v7x
topology: tpu7x:2x2x1
jax: 0.10.0
libtpu: 0.0.40
codegen_flags: <defaults>
</compile_context>

<pallas_src>
import functools

import jax
import jax.numpy as jnp
from jax.experimental import pallas as pl
from jax.experimental.pallas import tpu as pltpu

LANES = 128


def _round_up(n, m):
    return pl.cdiv(n, m) * m


def _make_dqn7l_kernel(compute_dtype):
    """Fused 8-matmul MLP (layer3 applied twice); one packed batch tile per step."""

    def kernel(x_ref,
               w1, b1, w2, b2, w3, b3, w4, b4, w5, b5, w6, b6, w7, b7,
               out_ref):
        def linear(h, w, b, relu=True):
            # bf16 (or f32) MXU inputs, f32 accumulation; bias-add/ReLU in f32.
            y = jnp.dot(h.astype(compute_dtype), w,
                        preferred_element_type=jnp.float32)
            y = y + b                       # (1, P*S) bias broadcast
            if relu:
                y = jnp.maximum(y, 0.0)
            return y

        h = x_ref[...]                                   # (tb, P*S), lane-dense
        h = linear(h, w1[...], b1[...])                  # relu(layer1(x))
        h = linear(h, w2[...], b2[...])                  # relu(layer2(x))
        w3f = w3[...]                                    # layer3 used twice:
        b3f = b3[...]                                    # load once, reuse
        h = linear(h, w3f, b3f)                          # relu(layer3(x))
        h = linear(h, w3f, b3f)                          # relu(layer3(x)) again
        h = linear(h, w4[...], b4[...])                  # relu(layer4(x))
        h = linear(h, w5[...], b5[...])                  # relu(layer5(x))
        h = linear(h, w6[...], b6[...])                  # relu(layer6(x))
        out_ref[...] = linear(h, w7[...], b7[...], relu=False).astype(out_ref.dtype)

    return kernel


@functools.partial(jax.jit, static_argnames=("block_b", "use_bf16"))
def dqn7l_forward(x, params, *, block_b=2048, use_bf16=True):
    """params: dict of (w_t, b) per layer; w_t is (in, out), b is (1, out).

    block_b:  max *packed* rows per grid step (each packed row carries P=128//S
              original batch rows after lane packing).
    use_bf16: cast x / weights / stored output to bf16 (f32 MXU accumulation);
              the returned array is cast back to f32.
    """
    B, n_obs = x.shape
    n_out = params["w7"].shape[1]
    # PyTorch forward only type-checks when layer5's output width matches
    # layer6's input width (n_actions == n_neurons).
    assert params["w5"].shape[1] == params["w6"].shape[0], \
        "DQN7L forward requires n_actions == n_neurons"

    compute_dtype = jnp.bfloat16 if use_bf16 else jnp.float32
    out_dtype = compute_dtype        # bf16 store halves writeback traffic (v5e)

    # ---- Lane-packing geometry --------------------------------------------
    # Pad every layer to (S, S); place P = 128//S copies block-diagonally so P
    # independent batch row-groups share the 128 lanes of each matmul.
    widths = [n_obs] + [params[f"w{i}"].shape[1] for i in range(1, 8)]
    S = max(widths)
    if S < LANES and LANES % S == 0:
        P = LANES // S
    else:                              # no packing, just lane-dense padding
        S = int(_round_up(S, LANES))
        P = 1
    packed_w = P * S                   # multiple of 128 -> lane-dense everywhere

    # ---- Batch tiling -------------------------------------------------------
    row_align = 16 if use_bf16 else 8          # bf16 packs 16 rows per vreg
    packed_rows = int(pl.cdiv(B, P))
    n_tiles = max(1, int(pl.cdiv(packed_rows, block_b)))
    if n_tiles == 1 and packed_rows >= 2 * row_align:
        n_tiles = 2                             # v7x megacore: feed both TCs
    tb = int(_round_up(int(pl.cdiv(packed_rows, n_tiles)), row_align))
    padded_packed_rows = tb * n_tiles
    padded_b = padded_packed_rows * P

    # ---- Pack inputs --------------------------------------------------------
    xp = jnp.pad(x, ((0, padded_b - B), (0, S - n_obs))).astype(compute_dtype)
    xp = xp.reshape(padded_packed_rows, packed_w)   # P batch rows -> 128 lanes

    def pack_w(w):
        wp = jnp.pad(w, ((0, S - w.shape[0]), (0, S - w.shape[1])))
        if P > 1:
            wp = jnp.kron(jnp.eye(P, dtype=wp.dtype), wp)   # block-diagonal
        return wp.astype(compute_dtype)

    def pack_b(b):
        bp = jnp.pad(b, ((0, 0), (0, S - b.shape[1])))
        return jnp.tile(bp, (1, P)).astype(jnp.float32)

    flat_inputs = [xp]
    in_specs = [pl.BlockSpec((tb, packed_w), lambda i: (i, 0))]
    for li in range(1, 8):
        wp = pack_w(params[f"w{li}"])
        bp = pack_b(params[f"b{li}"])
        flat_inputs += [wp, bp]
        # Constant index_map -> weights/biases DMA'd once, VMEM-resident.
        in_specs += [pl.BlockSpec(wp.shape, lambda i: (0, 0)),
                     pl.BlockSpec(bp.shape, lambda i: (0, 0))]

    out = pl.pallas_call(
        _make_dqn7l_kernel(compute_dtype),
        out_shape=jax.ShapeDtypeStruct((padded_packed_rows, packed_w), out_dtype),
        grid=(n_tiles,),
        in_specs=in_specs,
        out_specs=pl.BlockSpec((tb, packed_w), lambda i: (i, 0)),
        compiler_params=pltpu.CompilerParams(
            dimension_semantics=("parallel",),     # shard batch tiles across TCs
            vmem_limit_bytes=32 * 1024 * 1024,     # safe under v7x's 64 MiB VMEM
        ),
    )(*flat_inputs)

    # Un-pack lanes -> rows, drop padding, return f32 (cast fuses with the slice).
    out = out.reshape(padded_b, S)[:B, :n_out].astype(jnp.float32)
    return out


def init_params(key, n_observations, n_actions, n_neurons):
    """Deterministic init mimicking nn.Linear default (uniform +-1/sqrt(fan_in)).
    Weights are stored transposed: (in, out)."""
    dims = {
        1: (n_observations, n_neurons),
        2: (n_neurons, n_neurons),
        3: (n_neurons, n_neurons),   # second definition of layer3 wins
        4: (n_neurons, n_neurons),
        5: (n_neurons, n_actions),
        6: (n_neurons, n_neurons),
        7: (n_neurons, n_neurons),
    }
    params = {}
    for i, (fan_in, fan_out) in dims.items():
        key, kw, kb = jax.random.split(key, 3)
        bound = 1.0 / jnp.sqrt(jnp.float32(fan_in))
        params[f"w{i}"] = jax.random.uniform(
            kw, (fan_in, fan_out), jnp.float32, -bound, bound)
        params[f"b{i}"] = jax.random.uniform(
            kb, (1, fan_out), jnp.float32, -bound, bound)
    return params


def dqn7l_reference(x, params):
    """Pure-JAX reference replicating the PyTorch forward exactly."""
    def lin(h, i, relu=True):
        y = h @ params[f"w{i}"] + params[f"b{i}"]
        return jnp.maximum(y, 0.0) if relu else y
    h = lin(x, 1)
    h = lin(h, 2)
    h = lin(h, 3)
    h = lin(h, 3)
    h = lin(h, 4)
    h = lin(h, 5)
    h = lin(h, 6)
    return lin(h, 7, relu=False)


if __name__ == "__main__":
    # Shapes consistent with the module: batch=2, n_obs=8, n_neurons=32,
    # n_actions=32 (must equal n_neurons, see note above).
    B, n_obs, n_neurons, n_actions = 2, 8, 32, 32

    key = jax.random.PRNGKey(0)
    kx, kp, kx2 = jax.random.split(key, 3)
    x = jax.random.normal(kx, (B, n_obs), jnp.float32)
    params = init_params(kp, n_obs, n_actions, n_neurons)

    # 1) Small batch, f32 path: tight accuracy check against the reference.
    out = dqn7l_forward(x, params, block_b=2048, use_bf16=False)
    out = jax.block_until_ready(out)
    ref = dqn7l_reference(x, params)
    assert out.shape == (B, n_neurons), out.shape
    assert jnp.allclose(out, ref, atol=1e-4, rtol=1e-4), \
        float(jnp.max(jnp.abs(out - ref)))

    # 2) Larger ragged batch, bf16 path: exercises lane packing, multi-tile grid
    #    (>=2 steps for megacore), padding and bf16 store path.
    B2 = 300
    x2 = jax.random.normal(kx2, (B2, n_obs), jnp.float32)
    out2 = dqn7l_forward(x2, params, block_b=2048, use_bf16=True)
    out2 = jax.block_until_ready(out2)
    ref2 = dqn7l_reference(x2, params)
    assert out2.shape == (B2, n_neurons), out2.shape
    assert jnp.allclose(out2, ref2, atol=5e-2, rtol=5e-2), \
        float(jnp.max(jnp.abs(out2 - ref2)))

    print("KERNEL_OK")
</pallas_src>

<mosaic_0001>
module attributes {stable_mosaic.version = 11 : i64} {
  func.func @kernel(%arg0: i32, %arg1: memref<8x128xf32, #tpu.memory_space<vmem>>, %arg2: memref<128x128xf32, #tpu.memory_space<vmem>>, %arg3: memref<1x128xf32, #tpu.memory_space<vmem>>, %arg4: memref<128x128xf32, #tpu.memory_space<vmem>>, %arg5: memref<1x128xf32, #tpu.memory_space<vmem>>, %arg6: memref<128x128xf32, #tpu.memory_space<vmem>>, %arg7: memref<1x128xf32, #tpu.memory_space<vmem>>, %arg8: memref<128x128xf32, #tpu.memory_space<vmem>>, %arg9: memref<1x128xf32, #tpu.memory_space<vmem>>, %arg10: memref<128x128xf32, #tpu.memory_space<vmem>>, %arg11: memref<1x128xf32, #tpu.memory_space<vmem>>, %arg12: memref<128x128xf32, #tpu.memory_space<vmem>>, %arg13: memref<1x128xf32, #tpu.memory_space<vmem>>, %arg14: memref<128x128xf32, #tpu.memory_space<vmem>>, %arg15: memref<1x128xf32, #tpu.memory_space<vmem>>, %arg16: memref<8x128xf32, #tpu.memory_space<vmem>>) attributes {dimension_semantics = [#tpu.dimension_semantics<parallel>], iteration_bounds = array<i64: 1>, scalar_prefetch = 0 : i64, scratch_operands = 0 : i64, tpu.core_type = #tpu.core_type<tc>, window_params = [{transform_indices = @transform_0, window_bounds = array<i64: 8, 128>}, {pipeline_mode = #tpu.pipeline_mode<synchronous>, transform_indices = @transform_1, window_bounds = array<i64: 128, 128>}, {pipeline_mode = #tpu.pipeline_mode<synchronous>, transform_indices = @transform_2, window_bounds = array<i64: 1, 128>}, {pipeline_mode = #tpu.pipeline_mode<synchronous>, transform_indices = @transform_3, window_bounds = array<i64: 128, 128>}, {pipeline_mode = #tpu.pipeline_mode<synchronous>, transform_indices = @transform_4, window_bounds = array<i64: 1, 128>}, {pipeline_mode = #tpu.pipeline_mode<synchronous>, transform_indices = @transform_5, window_bounds = array<i64: 128, 128>}, {pipeline_mode = #tpu.pipeline_mode<synchronous>, transform_indices = @transform_6, window_bounds = array<i64: 1, 128>}, {pipeline_mode = #tpu.pipeline_mode<synchronous>, transform_indices = @transform_7, window_bounds = array<i64: 128, 128>}, {pipeline_mode = #tpu.pipeline_mode<synchronous>, transform_indices = @transform_8, window_bounds = array<i64: 1, 128>}, {pipeline_mode = #tpu.pipeline_mode<synchronous>, transform_indices = @transform_9, window_bounds = array<i64: 128, 128>}, {pipeline_mode = #tpu.pipeline_mode<synchronous>, transform_indices = @transform_10, window_bounds = array<i64: 1, 128>}, {pipeline_mode = #tpu.pipeline_mode<synchronous>, transform_indices = @transform_11, window_bounds = array<i64: 128, 128>}, {pipeline_mode = #tpu.pipeline_mode<synchronous>, transform_indices = @transform_12, window_bounds = array<i64: 1, 128>}, {pipeline_mode = #tpu.pipeline_mode<synchronous>, transform_indices = @transform_13, window_bounds = array<i64: 128, 128>}, {pipeline_mode = #tpu.pipeline_mode<synchronous>, transform_indices = @transform_14, window_bounds = array<i64: 1, 128>}, {transform_indices = @transform_15, window_bounds = array<i64: 8, 128>}]} {
    %c0 = arith.constant 0 : index
    %c0_0 = arith.constant 0 : index
    %0 = vector.load %arg1[%c0, %c0_0] : memref<8x128xf32, #tpu.memory_space<vmem>>, vector<8x128xf32>
    %c0_1 = arith.constant 0 : index
    %c0_2 = arith.constant 0 : index
    %1 = vector.load %arg2[%c0_1, %c0_2] : memref<128x128xf32, #tpu.memory_space<vmem>>, vector<128x128xf32>
    %c0_3 = arith.constant 0 : index
    %c0_4 = arith.constant 0 : index
    %2 = vector.load %arg3[%c0_3, %c0_4] : memref<1x128xf32, #tpu.memory_space<vmem>>, vector<1x128xf32>
    %cst = arith.constant dense<0.000000e+00> : vector<8x128xf32>
    %3 = tpu.matmul %0, %1, %cst {dimension_numbers = #tpu.dot_dimension_numbers<[1], [0], [0], [1], [0, 0, 1, 1], [], []>} : vector<8x128xf32>, vector<128x128xf32>, vector<8x128xf32> -> vector<8x128xf32>
    %4 = vector.broadcast %2 : vector<1x128xf32> to vector<8x128xf32>
    %5 = arith.addf %3, %4 : vector<8x128xf32>
    %cst_5 = arith.constant 0.000000e+00 : f32
    %6 = vector.broadcast %cst_5 : f32 to vector<8x128xf32>
    %7 = arith.maximumf %5, %6 : vector<8x128xf32>
    %c0_6 = arith.constant 0 : index
    %c0_7 = arith.constant 0 : index
    %8 = vector.load %arg4[%c0_6, %c0_7] : memref<128x128xf32, #tpu.memory_space<vmem>>, vector<128x128xf32>
    %c0_8 = arith.constant 0 : index
    %c0_9 = arith.constant 0 : index
    %9 = vector.load %arg5[%c0_8, %c0_9] : memref<1x128xf32, #tpu.memory_space<vmem>>, vector<1x128xf32>
    %cst_10 = arith.constant dense<0.000000e+00> : vector<8x128xf32>
    %10 = tpu.matmul %7, %8, %cst_10 {dimension_numbers = #tpu.dot_dimension_numbers<[1], [0], [0], [1], [0, 0, 1, 1], [], []>} : vector<8x128xf32>, vector<128x128xf32>, vector<8x128xf32> -> vector<8x128xf32>
    %11 = vector.broadcast %9 : vector<1x128xf32> to vector<8x128xf32>
    %12 = arith.addf %10, %11 : vector<8x128xf32>
    %cst_11 = arith.constant 0.000000e+00 : f32
    %13 = vector.broadcast %cst_11 : f32 to vector<8x128xf32>
    %14 = arith.maximumf %12, %13 : vector<8x128xf32>
    %c0_12 = arith.constant 0 : index
    %c0_13 = arith.constant 0 : index
    %15 = vector.load %arg6[%c0_12, %c0_13] : memref<128x128xf32, #tpu.memory_space<vmem>>, vector<128x128xf32>
    %c0_14 = arith.constant 0 : index
    %c0_15 = arith.constant 0 : index
    %16 = vector.load %arg7[%c0_14, %c0_15] : memref<1x128xf32, #tpu.memory_space<vmem>>, vector<1x128xf32>
    %cst_16 = arith.constant dense<0.000000e+00> : vector<8x128xf32>
    %17 = tpu.matmul %14, %15, %cst_16 {dimension_numbers = #tpu.dot_dimension_numbers<[1], [0], [0], [1], [0, 0, 1, 1], [], []>} : vector<8x128xf32>, vector<128x128xf32>, vector<8x128xf32> -> vector<8x128xf32>
    %18 = vector.broadcast %16 : vector<1x128xf32> to vector<8x128xf32>
    %19 = arith.addf %17, %18 : vector<8x128xf32>
    %cst_17 = arith.constant 0.000000e+00 : f32
    %20 = vector.broadcast %cst_17 : f32 to vector<8x128xf32>
    %21 = arith.maximumf %19, %20 : vector<8x128xf32>
    %cst_18 = arith.constant dense<0.000000e+00> : vector<8x128xf32>
    %22 = tpu.matmul %21, %15, %cst_18 {dimension_numbers = #tpu.dot_dimension_numbers<[1], [0], [0], [1], [0, 0, 1, 1], [], []>} : vector<8x128xf32>, vector<128x128xf32>, vector<8x128xf32> -> vector<8x128xf32>
    %23 = vector.broadcast %16 : vector<1x128xf32> to vector<8x128xf32>
    %24 = arith.addf %22, %23 : vector<8x128xf32>
    %cst_19 = arith.constant 0.000000e+00 : f32
    %25 = vector.broadcast %cst_19 : f32 to vector<8x128xf32>
    %26 = arith.maximumf %24, %25 : vector<8x128xf32>
    %c0_20 = arith.constant 0 : index
    %c0_21 = arith.constant 0 : index
    %27 = vector.load %arg8[%c0_20, %c0_21] : memref<128x128xf32, #tpu.memory_space<vmem>>, vector<128x128xf32>
    %c0_22 = arith.constant 0 : index
    %c0_23 = arith.constant 0 : index
    %28 = vector.load %arg9[%c0_22, %c0_23] : memref<1x128xf32, #tpu.memory_space<vmem>>, vector<1x128xf32>
    %cst_24 = arith.constant dense<0.000000e+00> : vector<8x128xf32>
    %29 = tpu.matmul %26, %27, %cst_24 {dimension_numbers = #tpu.dot_dimension_numbers<[1], [0], [0], [1], [0, 0, 1, 1], [], []>} : vector<8x128xf32>, vector<128x128xf32>, vector<8x128xf32> -> vector<8x128xf32>
    %30 = vector.broadcast %28 : vector<1x128xf32> to vector<8x128xf32>
    %31 = arith.addf %29, %30 : vector<8x128xf32>
    %cst_25 = arith.constant 0.000000e+00 : f32
    %32 = vector.broadcast %cst_25 : f32 to vector<8x128xf32>
    %33 = arith.maximumf %31, %32 : vector<8x128xf32>
    %c0_26 = arith.constant 0 : index
    %c0_27 = arith.constant 0 : index
    %34 = vector.load %arg10[%c0_26, %c0_27] : memref<128x128xf32, #tpu.memory_space<vmem>>, vector<128x128xf32>
    %c0_28 = arith.constant 0 : index
    %c0_29 = arith.constant 0 : index
    %35 = vector.load %arg11[%c0_28, %c0_29] : memref<1x128xf32, #tpu.memory_space<vmem>>, vector<1x128xf32>
    %cst_30 = arith.constant dense<0.000000e+00> : vector<8x128xf32>
    %36 = tpu.matmul %33, %34, %cst_30 {dimension_numbers = #tpu.dot_dimension_numbers<[1], [0], [0], [1], [0, 0, 1, 1], [], []>} : vector<8x128xf32>, vector<128x128xf32>, vector<8x128xf32> -> vector<8x128xf32>
    %37 = vector.broadcast %35 : vector<1x128xf32> to vector<8x128xf32>
    %38 = arith.addf %36, %37 : vector<8x128xf32>
    %cst_31 = arith.constant 0.000000e+00 : f32
    %39 = vector.broadcast %cst_31 : f32 to vector<8x128xf32>
    %40 = arith.maximumf %38, %39 : vector<8x128xf32>
    %c0_32 = arith.constant 0 : index
    %c0_33 = arith.constant 0 : index
    %41 = vector.load %arg12[%c0_32, %c0_33] : memref<128x128xf32, #tpu.memory_space<vmem>>, vector<128x128xf32>
    %c0_34 = arith.constant 0 : index
    %c0_35 = arith.constant 0 : index
    %42 = vector.load %arg13[%c0_34, %c0_35] : memref<1x128xf32, #tpu.memory_space<vmem>>, vector<1x128xf32>
    %cst_36 = arith.constant dense<0.000000e+00> : vector<8x128xf32>
    %43 = tpu.matmul %40, %41, %cst_36 {dimension_numbers = #tpu.dot_dimension_numbers<[1], [0], [0], [1], [0, 0, 1, 1], [], []>} : vector<8x128xf32>, vector<128x128xf32>, vector<8x128xf32> -> vector<8x128xf32>
    %44 = vector.broadcast %42 : vector<1x128xf32> to vector<8x128xf32>
    %45 = arith.addf %43, %44 : vector<8x128xf32>
    %cst_37 = arith.constant 0.000000e+00 : f32
    %46 = vector.broadcast %cst_37 : f32 to vector<8x128xf32>
    %47 = arith.maximumf %45, %46 : vector<8x128xf32>
    %c0_38 = arith.constant 0 : index
    %c0_39 = arith.constant 0 : index
    %48 = vector.load %arg14[%c0_38, %c0_39] : memref<128x128xf32, #tpu.memory_space<vmem>>, vector<128x128xf32>
    %c0_40 = arith.constant 0 : index
    %c0_41 = arith.constant 0 : index
    %49 = vector.load %arg15[%c0_40, %c0_41] : memref<1x128xf32, #tpu.memory_space<vmem>>, vector<1x128xf32>
    %cst_42 = arith.constant dense<0.000000e+00> : vector<8x128xf32>
    %50 = tpu.matmul %47, %48, %cst_42 {dimension_numbers = #tpu.dot_dimension_numbers<[1], [0], [0], [1], [0, 0, 1, 1], [], []>} : vector<8x128xf32>, vector<128x128xf32>, vector<8x128xf32> -> vector<8x128xf32>
    %51 = vector.broadcast %49 : vector<1x128xf32> to vector<8x128xf32>
    %52 = arith.addf %50, %51 : vector<8x128xf32>
    %c0_43 = arith.constant 0 : index
    %c0_44 = arith.constant 0 : index
    %53 = vector.load %arg16[%c0_43, %c0_44] : memref<8x128xf32, #tpu.memory_space<vmem>>, vector<8x128xf32>
    tpu.vector_store %arg16[%c0_43, %c0_44], %52 {strides = array<i32>} : memref<8x128xf32, #tpu.memory_space<vmem>>, vector<8x128xf32>,
    return
  }
  func.func @transform_0(%arg0: i32) -> (i32, i32) {
    %c0_i32 = arith.constant 0 : i32
    %c0_i32_0 = arith.constant 0 : i32
    return %arg0, %c0_i32 : i32, i32
  }
  func.func @transform_1(%arg0: i32) -> (i32, i32) {
    %c0_i32 = arith.constant 0 : i32
    %c0_i32_0 = arith.constant 0 : i32
    %c0_i32_1 = arith.constant 0 : i32
    return %c0_i32, %c0_i32_0 : i32, i32
  }
  func.func @transform_2(%arg0: i32) -> (i32, i32) {
    %c0_i32 = arith.constant 0 : i32
    %c0_i32_0 = arith.constant 0 : i32
    %c0_i32_1 = arith.constant 0 : i32
    return %c0_i32, %c0_i32_0 : i32, i32
  }
  func.func @transform_3(%arg0: i32) -> (i32, i32) {
    %c0_i32 = arith.constant 0 : i32
    %c0_i32_0 = arith.constant 0 : i32
    %c0_i32_1 = arith.constant 0 : i32
    return %c0_i32, %c0_i32_0 : i32, i32
  }
  func.func @transform_4(%arg0: i32) -> (i32, i32) {
    %c0_i32 = arith.constant 0 : i32
    %c0_i32_0 = arith.constant 0 : i32
    %c0_i32_1 = arith.constant 0 : i32
    return %c0_i32, %c0_i32_0 : i32, i32
  }
  func.func @transform_5(%arg0: i32) -> (i32, i32) {
    %c0_i32 = arith.constant 0 : i32
    %c0_i32_0 = arith.constant 0 : i32
    %c0_i32_1 = arith.constant 0 : i32
    return %c0_i32, %c0_i32_0 : i32, i32
  }
  func.func @transform_6(%arg0: i32) -> (i32, i32) {
    %c0_i32 = arith.constant 0 : i32
    %c0_i32_0 = arith.constant 0 : i32
    %c0_i32_1 = arith.constant 0 : i32
    return %c0_i32, %c0_i32_0 : i32, i32
  }
  func.func @transform_7(%arg0: i32) -> (i32, i32) {
    %c0_i32 = arith.constant 0 : i32
    %c0_i32_0 = arith.constant 0 : i32
    %c0_i32_1 = arith.constant 0 : i32
    return %c0_i32, %c0_i32_0 : i32, i32
  }
  func.func @transform_8(%arg0: i32) -> (i32, i32) {
    %c0_i32 = arith.constant 0 : i32
    %c0_i32_0 = arith.constant 0 : i32
    %c0_i32_1 = arith.constant 0 : i32
    return %c0_i32, %c0_i32_0 : i32, i32
  }
  func.func @transform_9(%arg0: i32) -> (i32, i32) {
    %c0_i32 = arith.constant 0 : i32
    %c0_i32_0 = arith.constant 0 : i32
    %c0_i32_1 = arith.constant 0 : i32
    return %c0_i32, %c0_i32_0 : i32, i32
  }
  func.func @transform_10(%arg0: i32) -> (i32, i32) {
    %c0_i32 = arith.constant 0 : i32
    %c0_i32_0 = arith.constant 0 : i32
    %c0_i32_1 = arith.constant 0 : i32
    return %c0_i32, %c0_i32_0 : i32, i32
  }
  func.func @transform_11(%arg0: i32) -> (i32, i32) {
    %c0_i32 = arith.constant 0 : i32
    %c0_i32_0 = arith.constant 0 : i32
    %c0_i32_1 = arith.constant 0 : i32
    return %c0_i32, %c0_i32_0 : i32, i32
  }
  func.func @transform_12(%arg0: i32) -> (i32, i32) {
    %c0_i32 = arith.constant 0 : i32
    %c0_i32_0 = arith.constant 0 : i32
    %c0_i32_1 = arith.constant 0 : i32
    return %c0_i32, %c0_i32_0 : i32, i32
  }
  func.func @transform_13(%arg0: i32) -> (i32, i32) {
    %c0_i32 = arith.constant 0 : i32
    %c0_i32_0 = arith.constant 0 : i32
    %c0_i32_1 = arith.constant 0 : i32
    return %c0_i32, %c0_i32_0 : i32, i32
  }
  func.func @transform_14(%arg0: i32) -> (i32, i32) {
    %c0_i32 = arith.constant 0 : i32
    %c0_i32_0 = arith.constant 0 : i32
    %c0_i32_1 = arith.constant 0 : i32
    return %c0_i32, %c0_i32_0 : i32, i32
  }
  func.func @transform_15(%arg0: i32) -> (i32, i32) {
    %c0_i32 = arith.constant 0 : i32
    %c0_i32_0 = arith.constant 0 : i32
    return %arg0, %c0_i32 : i32, i32
  }
}

</mosaic_0001>

<llo_original>
// kernel: dqn7l_forward.1
$region0: #{dqn7l_forward.1}
  #allocation0 [shape = 'u32[]', space=smem, size = 0x4, offset = 0x4, fixed_abs, tag = 'smem constant byte address 0x4 - core index']
  #allocation1 [shape = 'u32[144,128]{1,0:T(1,128)}', space=vmem, size = 0x12000, scoped, tag = 'internal scratch']
  %s0 = inlined_call_operand.vmem [shape: f32[8,128], index: 0, kind: input, shape index: {}]
  %s1 = inlined_call_operand.vmem [shape: f32[128,128], index: 1, kind: input, shape index: {}]
  %s2 = inlined_call_operand.vmem [shape: f32[1,128], index: 2, kind: input, shape index: {}]
  %s3 = inlined_call_operand.vmem [shape: f32[128,128], index: 3, kind: input, shape index: {}]
  %s4 = inlined_call_operand.vmem [shape: f32[1,128], index: 4, kind: input, shape index: {}]
  %s5 = inlined_call_operand.vmem [shape: f32[128,128], index: 5, kind: input, shape index: {}]
  %s6 = inlined_call_operand.vmem [shape: f32[1,128], index: 6, kind: input, shape index: {}]
  %s7 = inlined_call_operand.vmem [shape: f32[128,128], index: 7, kind: input, shape index: {}]
  %s8 = inlined_call_operand.vmem [shape: f32[1,128], index: 8, kind: input, shape index: {}]
  %s9 = inlined_call_operand.vmem [shape: f32[128,128], index: 9, kind: input, shape index: {}]
  %s10 = inlined_call_operand.vmem [shape: f32[1,128], index: 10, kind: input, shape index: {}]
  %s11 = inlined_call_operand.vmem [shape: f32[128,128], index: 11, kind: input, shape index: {}]
  %s12 = inlined_call_operand.vmem [shape: f32[1,128], index: 12, kind: input, shape index: {}]
  %s13 = inlined_call_operand.vmem [shape: f32[128,128], index: 13, kind: input, shape index: {}]
  %s14 = inlined_call_operand.vmem [shape: f32[1,128], index: 14, kind: input, shape index: {}]
  %s15 = inlined_call_operand.vmem [shape: f32[8,128], index: 15, kind: output, shape index: {}]
  %s16 = sld [smem:[#allocation0]]
  $region70: #{dqn7l_forward.1} parent=0
    _
  %s18 = ssub.s32 1, %s16
  %s19 = scalar_select 0, %s18, %s16
  // Predicated region
  $region2: #{dqn7l_forward.1} parent=0 // pred_check
    _
  $region3: #{dqn7l_forward.1} parent=0 // pred_check_branch
    %21 = sbr.rel (0) target = $region5
  $region4: #{dqn7l_forward.1} parent=0 // pred_region
    _
  $region5: #{dqn7l_forward.1} parent=0 // pred_fallthru
    _
  // Predicated region
  $region6: #{dqn7l_forward.1} parent=0 // pred_check
    _
  $region7: #{dqn7l_forward.1} parent=0 // pred_check_branch
    %23 = sbr.rel (0) target = $region9
  $region8: #{dqn7l_forward.1} parent=0 // pred_region
    _
  $region9: #{dqn7l_forward.1} parent=0 // pred_fallthru
    _
  // Predicated region
  $region10: #{dqn7l_forward.1} parent=0 // pred_check
    _
  $region11: #{dqn7l_forward.1} parent=0 // pred_check_branch
    %25 = sbr.rel (0) target = $region13
  $region12: #{dqn7l_forward.1} parent=0 // pred_region
    _
  $region13: #{dqn7l_forward.1} parent=0 // pred_fallthru
    _
  // Predicated region
  $region14: #{dqn7l_forward.1} parent=0 // pred_check
    _
  $region15: #{dqn7l_forward.1} parent=0 // pred_check_branch
    %27 = sbr.rel (0) target = $region17
  $region16: #{dqn7l_forward.1} parent=0 // pred_region
    _
  $region17: #{dqn7l_forward.1} parent=0 // pred_fallthru
    _
  // Predicated region
  $region18: #{dqn7l_forward.1} parent=0 // pred_check
    _
  $region19: #{dqn7l_forward.1} parent=0 // pred_check_branch
    %29 = sbr.rel (0) target = $region21
  $region20: #{dqn7l_forward.1} parent=0 // pred_region
    _
  $region21: #{dqn7l_forward.1} parent=0 // pred_fallthru
    _
  // Predicated region
  $region22: #{dqn7l_forward.1} parent=0 // pred_check
    _
  $region23: #{dqn7l_forward.1} parent=0 // pred_check_branch
    %31 = sbr.rel (0) target = $region25
  $region24: #{dqn7l_forward.1} parent=0 // pred_region
    _
  $region25: #{dqn7l_forward.1} parent=0 // pred_fallthru
    _
  // Predicated region
  $region26: #{dqn7l_forward.1} parent=0 // pred_check
    _
  $region27: #{dqn7l_forward.1} parent=0 // pred_check_branch
    %33 = sbr.rel (0) target = $region29
  $region28: #{dqn7l_forward.1} parent=0 // pred_region
    _
  $region29: #{dqn7l_forward.1} parent=0 // pred_fallthru
    _
  // Predicated region
  $region30: #{dqn7l_forward.1} parent=0 // pred_check
    _
  $region31: #{dqn7l_forward.1} parent=0 // pred_check_branch
    %35 = sbr.rel (0) target = $region33
  $region32: #{dqn7l_forward.1} parent=0 // pred_region
    _
  $region33: #{dqn7l_forward.1} parent=0 // pred_fallthru
    _
  // Predicated region
  $region34: #{dqn7l_forward.1} parent=0 // pred_check
    _
  $region35: #{dqn7l_forward.1} parent=0 // pred_check_branch
    %37 = sbr.rel (0) target = $region37
  $region36: #{dqn7l_forward.1} parent=0 // pred_region
    _
  $region37: #{dqn7l_forward.1} parent=0 // pred_fallthru
    _
  // Predicated region
  $region38: #{dqn7l_forward.1} parent=0 // pred_check
    _
  $region39: #{dqn7l_forward.1} parent=0 // pred_check_branch
    %39 = sbr.rel (0) target = $region41
  $region40: #{dqn7l_forward.1} parent=0 // pred_region
    _
  $region41: #{dqn7l_forward.1} parent=0 // pred_fallthru
    _
  // Predicated region
  $region42: #{dqn7l_forward.1} parent=0 // pred_check
    _
  $region43: #{dqn7l_forward.1} parent=0 // pred_check_branch
    %41 = sbr.rel (0) target = $region45
  $region44: #{dqn7l_forward.1} parent=0 // pred_region
    _
  $region45: #{dqn7l_forward.1} parent=0 // pred_fallthru
    _
  // Predicated region
  $region46: #{dqn7l_forward.1} parent=0 // pred_check
    _
  $region47: #{dqn7l_forward.1} parent=0 // pred_check_branch
    %43 = sbr.rel (0) target = $region49
  $region48: #{dqn7l_forward.1} parent=0 // pred_region
    _
  $region49: #{dqn7l_forward.1} parent=0 // pred_fallthru
    _
  // Predicated region
  $region50: #{dqn7l_forward.1} parent=0 // pred_check
    _
  $region51: #{dqn7l_forward.1} parent=0 // pred_check_branch
    %45 = sbr.rel (0) target = $region53
  $region52: #{dqn7l_forward.1} parent=0 // pred_region
    _
  $region53: #{dqn7l_forward.1} parent=0 // pred_fallthru
    _
  // Predicated region
  $region54: #{dqn7l_forward.1} parent=0 // pred_check
    _
  $region55: #{dqn7l_forward.1} parent=0 // pred_check_branch
    %47 = sbr.rel (0) target = $region57
  $region56: #{dqn7l_forward.1} parent=0 // pred_region
    _
  $region57: #{dqn7l_forward.1} parent=0 // pred_fallthru
    _
  // Predicated region
  $region58: #{dqn7l_forward.1} parent=0 // pred_check
    _
  $region59: #{dqn7l_forward.1} parent=0 // pred_check_branch
    %49 = sbr.rel (0) target = $region61
  $region60: #{dqn7l_forward.1} parent=0 // pred_region
    _
  $region61: #{dqn7l_forward.1} parent=0 // pred_fallthru
    _
  %v50 = vld [vmem:[%s0] sm:$0xff]
  %v51 = vld [vmem:[%s1] sm:$0xff]
  %v52 = vld [vmem:[%s1 + $0x8] sm:$0xff]
  %v53 = vld [vmem:[%s1 + $0x10] sm:$0xff]
  %v54 = vld [vmem:[%s1 + $0x18] sm:$0xff]
  %v55 = vld [vmem:[%s1 + $0x20] sm:$0xff]
  %v56 = vld [vmem:[%s1 + $0x28] sm:$0xff]
  %v57 = vld [vmem:[%s1 + $0x30] sm:$0xff]
  %v58 = vld [vmem:[%s1 + $0x38] sm:$0xff]
  %v59 = vld [vmem:[%s1 + $0x40] sm:$0xff]
  %v60 = vld [vmem:[%s1 + $0x48] sm:$0xff]
  %v61 = vld [vmem:[%s1 + $0x50] sm:$0xff]
  %v62 = vld [vmem:[%s1 + $0x58] sm:$0xff]
  %v63 = vld [vmem:[%s1 + $0x60] sm:$0xff]
  %v64 = vld [vmem:[%s1 + $0x68] sm:$0xff]
  %v65 = vld [vmem:[%s1 + $0x70] sm:$0xff]
  %v66 = vld [vmem:[%s1 + $0x78] sm:$0xff]
  %v67 = vld [vmem:[%s2] sm:$0x1]
  %v69 = vlaneseq
  %v70 = vshrl.u32 %v69, 7
  %v71 = vsub.s32 0, %v70
  %v72 = vrot.slane %v67, %v71
  %74 = vmatprep.subr.mxu0 0.0
  %75 = vmatpush1.msra.mxu0 %v51
  %76 = vmatprep.subr.mxu0 0.0
  %77 = vmatpush1.msra.mxu0 %v52
  %78 = vmatprep.subr.mxu0 0.0
  %79 = vmatpush1.msra.mxu0 %v53
  %80 = vmatprep.subr.mxu0 0.0
  %81 = vmatpush1.msra.mxu0 %v54
  %82 = vmatprep.subr.mxu0 0.0
  %83 = vmatpush1.msra.mxu0 %v55
  %84 = vmatprep.subr.mxu0 0.0
  %85 = vmatpush1.msra.mxu0 %v56
  %86 = vmatprep.subr.mxu0 0.0
  %87 = vmatpush1.msra.mxu0 %v57
  %88 = vmatprep.subr.mxu0 0.0
  %89 = vmatpush1.msra.mxu0 %v58
  %90 = vmatprep.subr.mxu0 0.0
  %91 = vmatpush1.msra.mxu0 %v59
  %92 = vmatprep.subr.mxu0 0.0
  %93 = vmatpush1.msra.mxu0 %v60
  %94 = vmatprep.subr.mxu0 0.0
  %95 = vmatpush1.msra.mxu0 %v61
  %96 = vmatprep.subr.mxu0 0.0
  %97 = vmatpush1.msra.mxu0 %v62
  %98 = vmatprep.subr.mxu0 0.0
  %99 = vmatpush1.msra.mxu0 %v63
  %100 = vmatprep.subr.mxu0 0.0
  %101 = vmatpush1.msra.mxu0 %v64
  %102 = vmatprep.subr.mxu0 0.0
  %103 = vmatpush1.msra.mxu0 %v65
  %104 = vmatprep.subr.mxu0 0.0
  %105 = vmatpush1.msra.mxu0 %v66
  %106 = vmatprep.subr.mxu0 0.0
  %107 = vmatpush1.msra.mxu0 0.0
  %108 = vmatprep.subr.mxu0 0.0
  %109 = vmatpush1.msra.mxu0 0.0
  %110 = vmatprep.subr.mxu0 0.0
  %111 = vmatpush1.msra.mxu0 0.0
  %112 = vmatprep.subr.mxu0 0.0
  %113 = vmatpush1.msra.mxu0 0.0
  %114 = vmatprep.subr.mxu0 0.0
  %115 = vmatpush1.msra.mxu0 0.0
  %116 = vmatprep.subr.mxu0 0.0
  %117 = vmatpush1.msra.mxu0 0.0
  %118 = vmatprep.subr.mxu0 0.0
  %119 = vmatpush1.msra.mxu0 0.0
  %120 = vmatprep.subr.mxu0 0.0
  %121 = vmatpush1.msra.mxu0 0.0
  %122 = vmatprep.subr.mxu0 0.0
  %123 = vmatpush1.msra.mxu0 0.0
  %124 = vmatprep.subr.mxu0 0.0
  %125 = vmatpush1.msra.mxu0 0.0
  %126 = vmatprep.subr.mxu0 0.0
  %127 = vmatpush1.msra.mxu0 0.0
  %128 = vmatprep.subr.mxu0 0.0
  %129 = vmatpush1.msra.mxu0 0.0
  %130 = vmatprep.subr.mxu0 0.0
  %131 = vmatpush1.msra.mxu0 0.0
  %132 = vmatprep.subr.mxu0 0.0
  %133 = vmatpush1.msra.mxu0 0.0
  %134 = vmatprep.subr.mxu0 0.0
  %135 = vmatpush1.msra.mxu0 0.0
  %136 = vmatprep.subr.mxu0 0.0
  %137 = vmatpush1.msra.mxu0 0.0
  %138 = vmatprep.mubr.f32.mxu0 0.0
  %139 = vmatmul.mubr.f32.gmra.mrb[0].mxu0 %v50
  %v140 = vpop.f32.mrb[0].mxu0
  %v141 = vadd.f32 %v72, %v140
  %v142 = vpop.f32.mrb[0].mxu0
  %143 = vdwg.mxu0
  %v144 = vmax.f32 %v141, 0.0
  %v145 = vld [vmem:[%s3] sm:$0xff]
  %v146 = vld [vmem:[%s3 + $0x8] sm:$0xff]
  %v147 = vld [vmem:[%s3 + $0x10] sm:$0xff]
  %v148 = vld [vmem:[%s3 + $0x18] sm:$0xff]
  %v149 = vld [vmem:[%s3 + $0x20] sm:$0xff]
  %v150 = vld [vmem:[%s3 + $0x28] sm:$0xff]
  %v151 = vld [vmem:[%s3 + $0x30] sm:$0xff]
  %v152 = vld [vmem:[%s3 + $0x38] sm:$0xff]
  %v153 = vld [vmem:[%s3 + $0x40] sm:$0xff]
  %v154 = vld [vmem:[%s3 + $0x48] sm:$0xff]
  %v155 = vld [vmem:[%s3 + $0x50] sm:$0xff]
  %v156 = vld [vmem:[%s3 + $0x58] sm:$0xff]
  %v157 = vld [vmem:[%s3 + $0x60] sm:$0xff]
  %v158 = vld [vmem:[%s3 + $0x68] sm:$0xff]
  %v159 = vld [vmem:[%s3 + $0x70] sm:$0xff]
  %v160 = vld [vmem:[%s3 + $0x78] sm:$0xff]
  %v161 = vld [vmem:[%s4] sm:$0x1]
  %v163 = vlaneseq
  %v164 = vshrl.u32 %v163, 7
  %v165 = vsub.s32 0, %v164
  %v166 = vrot.slane %v161, %v165
  %168 = vmatprep.subr.mxu0 0.0
  %169 = vmatpush1.msra.mxu0 %v145
  %170 = vmatprep.subr.mxu0 0.0
  %171 = vmatpush1.msra.mxu0 %v146
  %172 = vmatprep.subr.mxu0 0.0
  %173 = vmatpush1.msra.mxu0 %v147
  %174 = vmatprep.subr.mxu0 0.0
  %175 = vmatpush1.msra.mxu0 %v148
  %176 = vmatprep.subr.mxu0 0.0
  %177 = vmatpush1.msra.mxu0 %v149
  %178 = vmatprep.subr.mxu0 0.0
  %179 = vmatpush1.msra.mxu0 %v150
  %180 = vmatprep.subr.mxu0 0.0
  %181 = vmatpush1.msra.mxu0 %v151
  %182 = vmatprep.subr.mxu0 0.0
  %183 = vmatpush1.msra.mxu0 %v152
  %184 = vmatprep.subr.mxu0 0.0
  %185 = vmatpush1.msra.mxu0 %v153
  %186 = vmatprep.subr.mxu0 0.0
  %187 = vmatpush1.msra.mxu0 %v154
  %188 = vmatprep.subr.mxu0 0.0
  %189 = vmatpush1.msra.mxu0 %v155
  %190 = vmatprep.subr.mxu0 0.0
  %191 = vmatpush1.msra.mxu0 %v156
  %192 = vmatprep.subr.mxu0 0.0
  %193 = vmatpush1.msra.mxu0 %v157
  %194 = vmatprep.subr.mxu0 0.0
  %195 = vmatpush1.msra.mxu0 %v158
  %196 = vmatprep.subr.mxu0 0.0
  %197 = vmatpush1.msra.mxu0 %v159
  %198 = vmatprep.subr.mxu0 0.0
  %199 = vmatpush1.msra.mxu0 %v160
  %200 = vmatprep.subr.mxu0 0.0
  %201 = vmatpush1.msra.mxu0 0.0
  %202 = vmatprep.subr.mxu0 0.0
  %203 = vmatpush1.msra.mxu0 0.0
  %204 = vmatprep.subr.mxu0 0.0
  %205 = vmatpush1.msra.mxu0 0.0
  %206 = vmatprep.subr.mxu0 0.0
  %207 = vmatpush1.msra.mxu0 0.0
  %208 = vmatprep.subr.mxu0 0.0
  %209 = vmatpush1.msra.mxu0 0.0
  %210 = vmatprep.subr.mxu0 0.0
  %211 = vmatpush1.msra.mxu0 0.0
  %212 = vmatprep.subr.mxu0 0.0
  %213 = vmatpush1.msra.mxu0 0.0
  %214 = vmatprep.subr.mxu0 0.0
  %215 = vmatpush1.msra.mxu0 0.0
  %216 = vmatprep.subr.mxu0 0.0
  %217 = vmatpush1.msra.mxu0 0.0
  %218 = vmatprep.subr.mxu0 0.0
  %219 = vmatpush1.msra.mxu0 0.0
  %220 = vmatprep.subr.mxu0 0.0
  %221 = vmatpush1.msra.mxu0 0.0
  %222 = vmatprep.subr.mxu0 0.0
  %223 = vmatpush1.msra.mxu0 0.0
  %224 = vmatprep.subr.mxu0 0.0
  %225 = vmatpush1.msra.mxu0 0.0
  %226 = vmatprep.subr.mxu0 0.0
  %227 = vmatpush1.msra.mxu0 0.0
  %228 = vmatprep.subr.mxu0 0.0
  %229 = vmatpush1.msra.mxu0 0.0
  %230 = vmatprep.subr.mxu0 0.0
  %231 = vmatpush1.msra.mxu0 0.0
  %232 = vmatprep.mubr.f32.mxu0 0.0
  %233 = vmatmul.mubr.f32.gmra.mrb[0].mxu0 %v144
  %v234 = vpop.f32.mrb[0].mxu0
  %v235 = vadd.f32 %v166, %v234
  %v236 = vpop.f32.mrb[0].mxu0
  %237 = vdwg.mxu0
  %v238 = vmax.f32 %v235, 0.0
  %v239 = vld [vmem:[%s5] sm:$0xff]
  %v240 = vld [vmem:[%s5 + $0x8] sm:$0xff]
  %v241 = vld [vmem:[%s5 + $0x10] sm:$0xff]
  %v242 = vld [vmem:[%s5 + $0x18] sm:$0xff]
  %v243 = vld [vmem:[%s5 + $0x20] sm:$0xff]
  %v244 = vld [vmem:[%s5 + $0x28] sm:$0xff]
  %v245 = vld [vmem:[%s5 + $0x30] sm:$0xff]
  %v246 = vld [vmem:[%s5 + $0x38] sm:$0xff]
  %v247 = vld [vmem:[%s5 + $0x40] sm:$0xff]
  %v248 = vld [vmem:[%s5 + $0x48] sm:$0xff]
  %v249 = vld [vmem:[%s5 + $0x50] sm:$0xff]
  %v250 = vld [vmem:[%s5 + $0x58] sm:$0xff]
  %v251 = vld [vmem:[%s5 + $0x60] sm:$0xff]
  %v252 = vld [vmem:[%s5 + $0x68] sm:$0xff]
  %v253 = vld [vmem:[%s5 + $0x70] sm:$0xff]
  %v254 = vld [vmem:[%s5 + $0x78] sm:$0xff]
  %v255 = vld [vmem:[%s6] sm:$0x1]
  %v257 = vlaneseq
  %v258 = vshrl.u32 %v257, 7
  %v259 = vsub.s32 0, %v258
  %v260 = vrot.slane %v255, %v259
  %262 = vmatprep.subr.mxu0 0.0
  %263 = vmatpush1.msra.mxu0 %v239
  %264 = vmatprep.subr.mxu0 0.0
  %265 = vmatpush1.msra.mxu0 %v240
  %266 = vmatprep.subr.mxu0 0.0
  %267 = vmatpush1.msra.mxu0 %v241
  %268 = vmatprep.subr.mxu0 0.0
  %269 = vmatpush1.msra.mxu0 %v242
  %270 = vmatprep.subr.mxu0 0.0
  %271 = vmatpush1.msra.mxu0 %v243
  %272 = vmatprep.subr.mxu0 0.0
  %273 = vmatpush1.msra.mxu0 %v244
  %274 = vmatprep.subr.mxu0 0.0
  %275 = vmatpush1.msra.mxu0 %v245
  %276 = vmatprep.subr.mxu0 0.0
  %277 = vmatpush1.msra.mxu0 %v246
  %278 = vmatprep.subr.mxu0 0.0
  %279 = vmatpush1.msra.mxu0 %v247
  %280 = vmatprep.subr.mxu0 0.0
  %281 = vmatpush1.msra.mxu0 %v248
  %282 = vmatprep.subr.mxu0 0.0
  %283 = vmatpush1.msra.mxu0 %v249
  %284 = vmatprep.subr.mxu0 0.0
  %285 = vmatpush1.msra.mxu0 %v250
  %286 = vmatprep.subr.mxu0 0.0
  %287 = vmatpush1.msra.mxu0 %v251
  %288 = vmatprep.subr.mxu0 0.0
  %289 = vmatpush1.msra.mxu0 %v252
  %290 = vmatprep.subr.mxu0 0.0
  %291 = vmatpush1.msra.mxu0 %v253
  %292 = vmatprep.subr.mxu0 0.0
  %293 = vmatpush1.msra.mxu0 %v254
  %294 = vmatprep.subr.mxu0 0.0
  %295 = vmatpush1.msra.mxu0 0.0
  %296 = vmatprep.subr.mxu0 0.0
  %297 = vmatpush1.msra.mxu0 0.0
  %298 = vmatprep.subr.mxu0 0.0
  %299 = vmatpush1.msra.mxu0 0.0
  %300 = vmatprep.subr.mxu0 0.0
  %301 = vmatpush1.msra.mxu0 0.0
  %302 = vmatprep.subr.mxu0 0.0
  %303 = vmatpush1.msra.mxu0 0.0
  %304 = vmatprep.subr.mxu0 0.0
  %305 = vmatpush1.msra.mxu0 0.0
  %306 = vmatprep.subr.mxu0 0.0
  %307 = vmatpush1.msra.mxu0 0.0
  %308 = vmatprep.subr.mxu0 0.0
  %309 = vmatpush1.msra.mxu0 0.0
  %310 = vmatprep.subr.mxu0 0.0
  %311 = vmatpush1.msra.mxu0 0.0
  %312 = vmatprep.subr.mxu0 0.0
  %313 = vmatpush1.msra.mxu0 0.0
  %314 = vmatprep.subr.mxu0 0.0
  %315 = vmatpush1.msra.mxu0 0.0
  %316 = vmatprep.subr.mxu0 0.0
  %317 = vmatpush1.msra.mxu0 0.0
  %318 = vmatprep.subr.mxu0 0.0
  %319 = vmatpush1.msra.mxu0 0.0
  %320 = vmatprep.subr.mxu0 0.0
  %321 = vmatpush1.msra.mxu0 0.0
  %322 = vmatprep.subr.mxu0 0.0
  %323 = vmatpush1.msra.mxu0 0.0
  %324 = vmatprep.subr.mxu0 0.0
  %325 = vmatpush1.msra.mxu0 0.0
  %326 = vmatprep.mubr.f32.mxu0 0.0
  %327 = vmatmul.mubr.f32.gmra.mrb[0].mxu0 %v238
  %v328 = vpop.f32.mrb[0].mxu0
  %v329 = vadd.f32 %v260, %v328
  %v330 = vpop.f32.mrb[0].mxu0
  %331 = vdwg.mxu0
  %v332 = vmax.f32 %v329, 0.0
  %333 = vmatprep.subr.mxu0 0.0
  %334 = vmatpush1.msra.mxu0 %v239
  %335 = vmatprep.subr.mxu0 0.0
  %336 = vmatpush1.msra.mxu0 %v240
  %337 = vmatprep.subr.mxu0 0.0
  %338 = vmatpush1.msra.mxu0 %v241
  %339 = vmatprep.subr.mxu0 0.0
  %340 = vmatpush1.msra.mxu0 %v242
  %341 = vmatprep.subr.mxu0 0.0
  %342 = vmatpush1.msra.mxu0 %v243
  %343 = vmatprep.subr.mxu0 0.0
  %344 = vmatpush1.msra.mxu0 %v244
  %345 = vmatprep.subr.mxu0 0.0
  %346 = vmatpush1.msra.mxu0 %v245
  %347 = vmatprep.subr.mxu0 0.0
  %348 = vmatpush1.msra.mxu0 %v246
  %349 = vmatprep.subr.mxu0 0.0
  %350 = vmatpush1.msra.mxu0 %v247
  %351 = vmatprep.subr.mxu0 0.0
  %352 = vmatpush1.msra.mxu0 %v248
  %353 = vmatprep.subr.mxu0 0.0
  %354 = vmatpush1.msra.mxu0 %v249
  %355 = vmatprep.subr.mxu0 0.0
  %356 = vmatpush1.msra.mxu0 %v250
  %357 = vmatprep.subr.mxu0 0.0
  %358 = vmatpush1.msra.mxu0 %v251
  %359 = vmatprep.subr.mxu0 0.0
  %360 = vmatpush1.msra.mxu0 %v252
  %361 = vmatprep.subr.mxu0 0.0
  %362 = vmatpush1.msra.mxu0 %v253
  %363 = vmatprep.subr.mxu0 0.0
  %364 = vmatpush1.msra.mxu0 %v254
  %365 = vmatprep.subr.mxu0 0.0
  %366 = vmatpush1.msra.mxu0 0.0
  %367 = vmatprep.subr.mxu0 0.0
  %368 = vmatpush1.msra.mxu0 0.0
  %369 = vmatprep.subr.mxu0 0.0
  %370 = vmatpush1.msra.mxu0 0.0
  %371 = vmatprep.subr.mxu0 0.0
  %372 = vmatpush1.msra.mxu0 0.0
  %373 = vmatprep.subr.mxu0 0.0
  %374 = vmatpush1.msra.mxu0 0.0
  %375 = vmatprep.subr.mxu0 0.0
  %376 = vmatpush1.msra.mxu0 0.0
  %377 = vmatprep.subr.mxu0 0.0
  %378 = vmatpush1.msra.mxu0 0.0
  %379 = vmatprep.subr.mxu0 0.0
  %380 = vmatpush1.msra.mxu0 0.0
  %381 = vmatprep.subr.mxu0 0.0
  %382 = vmatpush1.msra.mxu0 0.0
  %383 = vmatprep.subr.mxu0 0.0
  %384 = vmatpush1.msra.mxu0 0.0
  %385 = vmatprep.subr.mxu0 0.0
  %386 = vmatpush1.msra.mxu0 0.0
  %387 = vmatprep.subr.mxu0 0.0
  %388 = vmatpush1.msra.mxu0 0.0
  %389 = vmatprep.subr.mxu0 0.0
  %390 = vmatpush1.msra.mxu0 0.0
  %391 = vmatprep.subr.mxu0 0.0
  %392 = vmatpush1.msra.mxu0 0.0
  %393 = vmatprep.subr.mxu0 0.0
  %394 = vmatpush1.msra.mxu0 0.0
  %395 = vmatprep.subr.mxu0 0.0
  %396 = vmatpush1.msra.mxu0 0.0
  %397 = vmatprep.mubr.f32.mxu0 0.0
  %398 = vmatmul.mubr.f32.gmra.mrb[0].mxu0 %v332
  %v399 = vpop.f32.mrb[0].mxu0
  %v400 = vadd.f32 %v260, %v399
  %v401 = vpop.f32.mrb[0].mxu0
  %402 = vdwg.mxu0
  %v403 = vmax.f32 %v400, 0.0
  %v404 = vld [vmem:[%s7] sm:$0xff]
  %v405 = vld [vmem:[%s7 + $0x8] sm:$0xff]
  %v406 = vld [vmem:[%s7 + $0x10] sm:$0xff]
  %v407 = vld [vmem:[%s7 + $0x18] sm:$0xff]
  %v408 = vld [vmem:[%s7 + $0x20] sm:$0xff]
  %v409 = vld [vmem:[%s7 + $0x28] sm:$0xff]
  %v410 = vld [vmem:[%s7 + $0x30] sm:$0xff]
  %v411 = vld [vmem:[%s7 + $0x38] sm:$0xff]
  %v412 = vld [vmem:[%s7 + $0x40] sm:$0xff]
  %v413 = vld [vmem:[%s7 + $0x48] sm:$0xff]
  %v414 = vld [vmem:[%s7 + $0x50] sm:$0xff]
  %v415 = vld [vmem:[%s7 + $0x58] sm:$0xff]
  %v416 = vld [vmem:[%s7 + $0x60] sm:$0xff]
  %v417 = vld [vmem:[%s7 + $0x68] sm:$0xff]
  %v418 = vld [vmem:[%s7 + $0x70] sm:$0xff]
  %v419 = vld [vmem:[%s7 + $0x78] sm:$0xff]
  %v420 = vld [vmem:[%s8] sm:$0x1]
  %v422 = vlaneseq
  %v423 = vshrl.u32 %v422, 7
  %v424 = vsub.s32 0, %v423
  %v425 = vrot.slane %v420, %v424
  %427 = vmatprep.subr.mxu0 0.0
  %428 = vmatpush1.msra.mxu0 %v404
  %429 = vmatprep.subr.mxu0 0.0
  %430 = vmatpush1.msra.mxu0 %v405
  %431 = vmatprep.subr.mxu0 0.0
  %432 = vmatpush1.msra.mxu0 %v406
  %433 = vmatprep.subr.mxu0 0.0
  %434 = vmatpush1.msra.mxu0 %v407
  %435 = vmatprep.subr.mxu0 0.0
  %436 = vmatpush1.msra.mxu0 %v408
  %437 = vmatprep.subr.mxu0 0.0
  %438 = vmatpush1.msra.mxu0 %v409
  %439 = vmatprep.subr.mxu0 0.0
  %440 = vmatpush1.msra.mxu0 %v410
  %441 = vmatprep.subr.mxu0 0.0
  %442 = vmatpush1.msra.mxu0 %v411
  %443 = vmatprep.subr.mxu0 0.0
  %444 = vmatpush1.msra.mxu0 %v412
  %445 = vmatprep.subr.mxu0 0.0
  %446 = vmatpush1.msra.mxu0 %v413
  %447 = vmatprep.subr.mxu0 0.0
  %448 = vmatpush1.msra.mxu0 %v414
  %449 = vmatprep.subr.mxu0 0.0
  %450 = vmatpush1.msra.mxu0 %v415
  %451 = vmatprep.subr.mxu0 0.0
  %452 = vmatpush1.msra.mxu0 %v416
  %453 = vmatprep.subr.mxu0 0.0
  %454 = vmatpush1.msra.mxu0 %v417
  %455 = vmatprep.subr.mxu0 0.0
  %456 = vmatpush1.msra.mxu0 %v418
  %457 = vmatprep.subr.mxu0 0.0
  %458 = vmatpush1.msra.mxu0 %v419
  %459 = vmatprep.subr.mxu0 0.0
  %460 = vmatpush1.msra.mxu0 0.0
  %461 = vmatprep.subr.mxu0 0.0
  %462 = vmatpush1.msra.mxu0 0.0
  %463 = vmatprep.subr.mxu0 0.0
  %464 = vmatpush1.msra.mxu0 0.0
  %465 = vmatprep.subr.mxu0 0.0
  %466 = vmatpush1.msra.mxu0 0.0
  %467 = vmatprep.subr.mxu0 0.0
  %468 = vmatpush1.msra.mxu0 0.0
  %469 = vmatprep.subr.mxu0 0.0
  %470 = vmatpush1.msra.mxu0 0.0
  %471 = vmatprep.subr.mxu0 0.0
  %472 = vmatpush1.msra.mxu0 0.0
  %473 = vmatprep.subr.mxu0 0.0
  %474 = vmatpush1.msra.mxu0 0.0
  %475 = vmatprep.subr.mxu0 0.0
  %476 = vmatpush1.msra.mxu0 0.0
  %477 = vmatprep.subr.mxu0 0.0
  %478 = vmatpush1.msra.mxu0 0.0
  %479 = vmatprep.subr.mxu0 0.0
  %480 = vmatpush1.msra.mxu0 0.0
  %481 = vmatprep.subr.mxu0 0.0
  %482 = vmatpush1.msra.mxu0 0.0
  %483 = vmatprep.subr.mxu0 0.0
  %484 = vmatpush1.msra.mxu0 0.0
  %485 = vmatprep.subr.mxu0 0.0
  %486 = vmatpush1.msra.mxu0 0.0
  %487 = vmatprep.subr.mxu0 0.0
  %488 = vmatpush1.msra.mxu0 0.0
  %489 = vmatprep.subr.mxu0 0.0
  %490 = vmatpush1.msra.mxu0 0.0
  %491 = vmatprep.mubr.f32.mxu0 0.0
  %492 = vmatmul.mubr.f32.gmra.mrb[0].mxu0 %v403
  %v493 = vpop.f32.mrb[0].mxu0
  %v494 = vadd.f32 %v425, %v493
  %v495 = vpop.f32.mrb[0].mxu0
  %496 = vdwg.mxu0
  %v497 = vmax.f32 %v494, 0.0
  %v498 = vld [vmem:[%s9] sm:$0xff]
  %v499 = vld [vmem:[%s9 + $0x8] sm:$0xff]
  %v500 = vld [vmem:[%s9 + $0x10] sm:$0xff]
  %v501 = vld [vmem:[%s9 + $0x18] sm:$0xff]
  %v502 = vld [vmem:[%s9 + $0x20] sm:$0xff]
  %v503 = vld [vmem:[%s9 + $0x28] sm:$0xff]
  %v504 = vld [vmem:[%s9 + $0x30] sm:$0xff]
  %v505 = vld [vmem:[%s9 + $0x38] sm:$0xff]
  %v506 = vld [vmem:[%s9 + $0x40] sm:$0xff]
  %v507 = vld [vmem:[%s9 + $0x48] sm:$0xff]
  %v508 = vld [vmem:[%s9 + $0x50] sm:$0xff]
  %v509 = vld [vmem:[%s9 + $0x58] sm:$0xff]
  %v510 = vld [vmem:[%s9 + $0x60] sm:$0xff]
  %v511 = vld [vmem:[%s9 + $0x68] sm:$0xff]
  %v512 = vld [vmem:[%s9 + $0x70] sm:$0xff]
  %v513 = vld [vmem:[%s9 + $0x78] sm:$0xff]
  %v514 = vld [vmem:[%s10] sm:$0x1]
  %v516 = vlaneseq
  %v517 = vshrl.u32 %v516, 7
  %v518 = vsub.s32 0, %v517
  %v519 = vrot.slane %v514, %v518
  %521 = vmatprep.subr.mxu0 0.0
  %522 = vmatpush1.msra.mxu0 %v498
  %523 = vmatprep.subr.mxu0 0.0
  %524 = vmatpush1.msra.mxu0 %v499
  %525 = vmatprep.subr.mxu0 0.0
  %526 = vmatpush1.msra.mxu0 %v500
  %527 = vmatprep.subr.mxu0 0.0
  %528 = vmatpush1.msra.mxu0 %v501
  %529 = vmatprep.subr.mxu0 0.0
  %530 = vmatpush1.msra.mxu0 %v502
  %531 = vmatprep.subr.mxu0 0.0
  %532 = vmatpush1.msra.mxu0 %v503
  %533 = vmatprep.subr.mxu0 0.0
  %534 = vmatpush1.msra.mxu0 %v504
  %535 = vmatprep.subr.mxu0 0.0
  %536 = vmatpush1.msra.mxu0 %v505
  %537 = vmatprep.subr.mxu0 0.0
  %538 = vmatpush1.msra.mxu0 %v506
  %539 = vmatprep.subr.mxu0 0.0
  %540 = vmatpush1.msra.mxu0 %v507
  %541 = vmatprep.subr.mxu0 0.0
  %542 = vmatpush1.msra.mxu0 %v508
  %543 = vmatprep.subr.mxu0 0.0
  %544 = vmatpush1.msra.mxu0 %v509
  %545 = vmatprep.subr.mxu0 0.0
  %546 = vmatpush1.msra.mxu0 %v510
  %547 = vmatprep.subr.mxu0 0.0
  %548 = vmatpush1.msra.mxu0 %v511
  %549 = vmatprep.subr.mxu0 0.0
  %550 = vmatpush1.msra.mxu0 %v512
  %551 = vmatprep.subr.mxu0 0.0
  %552 = vmatpush1.msra.mxu0 %v513
  %553 = vmatprep.subr.mxu0 0.0
  %554 = vmatpush1.msra.mxu0 0.0
  %555 = vmatprep.subr.mxu0 0.0
  %556 = vmatpush1.msra.mxu0 0.0
  %557 = vmatprep.subr.mxu0 0.0
  %558 = vmatpush1.msra.mxu0 0.0
  %559 = vmatprep.subr.mxu0 0.0
  %560 = vmatpush1.msra.mxu0 0.0
  %561 = vmatprep.subr.mxu0 0.0
  %562 = vmatpush1.msra.mxu0 0.0
  %563 = vmatprep.subr.mxu0 0.0
  %564 = vmatpush1.msra.mxu0 0.0
  %565 = vmatprep.subr.mxu0 0.0
  %566 = vmatpush1.msra.mxu0 0.0
  %567 = vmatprep.subr.mxu0 0.0
  %568 = vmatpush1.msra.mxu0 0.0
  %569 = vmatprep.subr.mxu0 0.0
  %570 = vmatpush1.msra.mxu0 0.0
  %571 = vmatprep.subr.mxu0 0.0
  %572 = vmatpush1.msra.mxu0 0.0
  %573 = vmatprep.subr.mxu0 0.0
  %574 = vmatpush1.msra.mxu0 0.0
  %575 = vmatprep.subr.mxu0 0.0
  %576 = vmatpush1.msra.mxu0 0.0
  %577 = vmatprep.subr.mxu0 0.0
  %578 = vmatpush1.msra.mxu0 0.0
  %579 = vmatprep.subr.mxu0 0.0
  %580 = vmatpush1.msra.mxu0 0.0
  %581 = vmatprep.subr.mxu0 0.0
  %582 = vmatpush1.msra.mxu0 0.0
  %583 = vmatprep.subr.mxu0 0.0
  %584 = vmatpush1.msra.mxu0 0.0
  %585 = vmatprep.mubr.f32.mxu0 0.0
  %586 = vmatmul.mubr.f32.gmra.mrb[0].mxu0 %v497
  %v587 = vpop.f32.mrb[0].mxu0
  %v588 = vadd.f32 %v519, %v587
  %v589 = vpop.f32.mrb[0].mxu0
  %590 = vdwg.mxu0
  %v591 = vmax.f32 %v588, 0.0
  %v592 = vld [vmem:[%s11] sm:$0xff]
  %v593 = vld [vmem:[%s11 + $0x8] sm:$0xff]
  %v594 = vld [vmem:[%s11 + $0x10] sm:$0xff]
  %v595 = vld [vmem:[%s11 + $0x18] sm:$0xff]
  %v596 = vld [vmem:[%s11 + $0x20] sm:$0xff]
  %v597 = vld [vmem:[%s11 + $0x28] sm:$0xff]
  %v598 = vld [vmem:[%s11 + $0x30] sm:$0xff]
  %v599 = vld [vmem:[%s11 + $0x38] sm:$0xff]
  %v600 = vld [vmem:[%s11 + $0x40] sm:$0xff]
  %v601 = vld [vmem:[%s11 + $0x48] sm:$0xff]
  %v602 = vld [vmem:[%s11 + $0x50] sm:$0xff]
  %v603 = vld [vmem:[%s11 + $0x58] sm:$0xff]
  %v604 = vld [vmem:[%s11 + $0x60] sm:$0xff]
  %v605 = vld [vmem:[%s11 + $0x68] sm:$0xff]
  %v606 = vld [vmem:[%s11 + $0x70] sm:$0xff]
  %v607 = vld [vmem:[%s11 + $0x78] sm:$0xff]
  %v608 = vld [vmem:[%s12] sm:$0x1]
  %v610 = vlaneseq
  %v611 = vshrl.u32 %v610, 7
  %v612 = vsub.s32 0, %v611
  %v613 = vrot.slane %v608, %v612
  %615 = vmatprep.subr.mxu0 0.0
  %616 = vmatpush1.msra.mxu0 %v592
  %617 = vmatprep.subr.mxu0 0.0
  %618 = vmatpush1.msra.mxu0 %v593
  %619 = vmatprep.subr.mxu0 0.0
  %620 = vmatpush1.msra.mxu0 %v594
  %621 = vmatprep.subr.mxu0 0.0
  %622 = vmatpush1.msra.mxu0 %v595
  %623 = vmatprep.subr.mxu0 0.0
  %624 = vmatpush1.msra.mxu0 %v596
  %625 = vmatprep.subr.mxu0 0.0
  %626 = vmatpush1.msra.mxu0 %v597
  %627 = vmatprep.subr.mxu0 0.0
  %628 = vmatpush1.msra.mxu0 %v598
  %629 = vmatprep.subr.mxu0 0.0
  %630 = vmatpush1.msra.mxu0 %v599
  %631 = vmatprep.subr.mxu0 0.0
  %632 = vmatpush1.msra.mxu0 %v600
  %633 = vmatprep.subr.mxu0 0.0
  %634 = vmatpush1.msra.mxu0 %v601
  %635 = vmatprep.subr.mxu0 0.0
  %636 = vmatpush1.msra.mxu0 %v602
  %637 = vmatprep.subr.mxu0 0.0
  %638 = vmatpush1.msra.mxu0 %v603
  %639 = vmatprep.subr.mxu0 0.0
  %640 = vmatpush1.msra.mxu0 %v604
  %641 = vmatprep.subr.mxu0 0.0
  %642 = vmatpush1.msra.mxu0 %v605
  %643 = vmatprep.subr.mxu0 0.0
  %644 = vmatpush1.msra.mxu0 %v606
  %645 = vmatprep.subr.mxu0 0.0
  %646 = vmatpush1.msra.mxu0 %v607
  %647 = vmatprep.subr.mxu0 0.0
  %648 = vmatpush1.msra.mxu0 0.0
  %649 = vmatprep.subr.mxu0 0.0
  %650 = vmatpush1.msra.mxu0 0.0
  %651 = vmatprep.subr.mxu0 0.0
  %652 = vmatpush1.msra.mxu0 0.0
  %653 = vmatprep.subr.mxu0 0.0
  %654 = vmatpush1.msra.mxu0 0.0
  %655 = vmatprep.subr.mxu0 0.0
  %656 = vmatpush1.msra.mxu0 0.0
  %657 = vmatprep.subr.mxu0 0.0
  %658 = vmatpush1.msra.mxu0 0.0
  %659 = vmatprep.subr.mxu0 0.0
  %660 = vmatpush1.msra.mxu0 0.0
  %661 = vmatprep.subr.mxu0 0.0
  %662 = vmatpush1.msra.mxu0 0.0
  %663 = vmatprep.subr.mxu0 0.0
  %664 = vmatpush1.msra.mxu0 0.0
  %665 = vmatprep.subr.mxu0 0.0
  %666 = vmatpush1.msra.mxu0 0.0
  %667 = vmatprep.subr.mxu0 0.0
  %668 = vmatpush1.msra.mxu0 0.0
  %669 = vmatprep.subr.mxu0 0.0
  %670 = vmatpush1.msra.mxu0 0.0
  %671 = vmatprep.subr.mxu0 0.0
  %672 = vmatpush1.msra.mxu0 0.0
  %673 = vmatprep.subr.mxu0 0.0
  %674 = vmatpush1.msra.mxu0 0.0
  %675 = vmatprep.subr.mxu0 0.0
  %676 = vmatpush1.msra.mxu0 0.0
  %677 = vmatprep.subr.mxu0 0.0
  %678 = vmatpush1.msra.mxu0 0.0
  %679 = vmatprep.mubr.f32.mxu0 0.0
  %680 = vmatmul.mubr.f32.gmra.mrb[0].mxu0 %v591
  %v681 = vpop.f32.mrb[0].mxu0
  %v682 = vadd.f32 %v613, %v681
  %v683 = vpop.f32.mrb[0].mxu0
  %684 = vdwg.mxu0
  %v685 = vmax.f32 %v682, 0.0
  %v686 = vld [vmem:[%s13] sm:$0xff]
  %v687 = vld [vmem:[%s13 + $0x8] sm:$0xff]
  %v688 = vld [vmem:[%s13 + $0x10] sm:$0xff]
  %v689 = vld [vmem:[%s13 + $0x18] sm:$0xff]
  %v690 = vld [vmem:[%s13 + $0x20] sm:$0xff]
  %v691 = vld [vmem:[%s13 + $0x28] sm:$0xff]
  %v692 = vld [vmem:[%s13 + $0x30] sm:$0xff]
  %v693 = vld [vmem:[%s13 + $0x38] sm:$0xff]
  %v694 = vld [vmem:[%s13 + $0x40] sm:$0xff]
  %v695 = vld [vmem:[%s13 + $0x48] sm:$0xff]
  %v696 = vld [vmem:[%s13 + $0x50] sm:$0xff]
  %v697 = vld [vmem:[%s13 + $0x58] sm:$0xff]
  %v698 = vld [vmem:[%s13 + $0x60] sm:$0xff]
  %v699 = vld [vmem:[%s13 + $0x68] sm:$0xff]
  %v700 = vld [vmem:[%s13 + $0x70] sm:$0xff]
  %v701 = vld [vmem:[%s13 + $0x78] sm:$0xff]
  %v702 = vld [vmem:[%s14] sm:$0x1]
  %v704 = vlaneseq
  %v705 = vshrl.u32 %v704, 7
  %v706 = vsub.s32 0, %v705
  %v707 = vrot.slane %v702, %v706
  %709 = vmatprep.subr.mxu0 0.0
  %710 = vmatpush1.msra.mxu0 %v686
  %711 = vmatprep.subr.mxu0 0.0
  %712 = vmatpush1.msra.mxu0 %v687
  %713 = vmatprep.subr.mxu0 0.0
  %714 = vmatpush1.msra.mxu0 %v688
  %715 = vmatprep.subr.mxu0 0.0
  %716 = vmatpush1.msra.mxu0 %v689
  %717 = vmatprep.subr.mxu0 0.0
  %718 = vmatpush1.msra.mxu0 %v690
  %719 = vmatprep.subr.mxu0 0.0
  %720 = vmatpush1.msra.mxu0 %v691
  %721 = vmatprep.subr.mxu0 0.0
  %722 = vmatpush1.msra.mxu0 %v692
  %723 = vmatprep.subr.mxu0 0.0
  %724 = vmatpush1.msra.mxu0 %v693
  %725 = vmatprep.subr.mxu0 0.0
  %726 = vmatpush1.msra.mxu0 %v694
  %727 = vmatprep.subr.mxu0 0.0
  %728 = vmatpush1.msra.mxu0 %v695
  %729 = vmatprep.subr.mxu0 0.0
  %730 = vmatpush1.msra.mxu0 %v696
  %731 = vmatprep.subr.mxu0 0.0
  %732 = vmatpush1.msra.mxu0 %v697
  %733 = vmatprep.subr.mxu0 0.0
  %734 = vmatpush1.msra.mxu0 %v698
  %735 = vmatprep.subr.mxu0 0.0
  %736 = vmatpush1.msra.mxu0 %v699
  %737 = vmatprep.subr.mxu0 0.0
  %738 = vmatpush1.msra.mxu0 %v700
  %739 = vmatprep.subr.mxu0 0.0
  %740 = vmatpush1.msra.mxu0 %v701
  %741 = vmatprep.subr.mxu0 0.0
  %742 = vmatpush1.msra.mxu0 0.0
  %743 = vmatprep.subr.mxu0 0.0
  %744 = vmatpush1.msra.mxu0 0.0
  %745 = vmatprep.subr.mxu0 0.0
  %746 = vmatpush1.msra.mxu0 0.0
  %747 = vmatprep.subr.mxu0 0.0
  %748 = vmatpush1.msra.mxu0 0.0
  %749 = vmatprep.subr.mxu0 0.0
  %750 = vmatpush1.msra.mxu0 0.0
  %751 = vmatprep.subr.mxu0 0.0
  %752 = vmatpush1.msra.mxu0 0.0
  %753 = vmatprep.subr.mxu0 0.0
  %754 = vmatpush1.msra.mxu0 0.0
  %755 = vmatprep.subr.mxu0 0.0
  %756 = vmatpush1.msra.mxu0 0.0
  %757 = vmatprep.subr.mxu0 0.0
  %758 = vmatpush1.msra.mxu0 0.0
  %759 = vmatprep.subr.mxu0 0.0
  %760 = vmatpush1.msra.mxu0 0.0
  %761 = vmatprep.subr.mxu0 0.0
  %762 = vmatpush1.msra.mxu0 0.0
  %763 = vmatprep.subr.mxu0 0.0
  %764 = vmatpush1.msra.mxu0 0.0
  %765 = vmatprep.subr.mxu0 0.0
  %766 = vmatpush1.msra.mxu0 0.0
  %767 = vmatprep.subr.mxu0 0.0
  %768 = vmatpush1.msra.mxu0 0.0
  %769 = vmatprep.subr.mxu0 0.0
  %770 = vmatpush1.msra.mxu0 0.0
  %771 = vmatprep.subr.mxu0 0.0
  %772 = vmatpush1.msra.mxu0 0.0
  %773 = vmatprep.mubr.f32.mxu0 0.0
  %774 = vmatmul.mubr.f32.gmra.mrb[0].mxu0 %v685
  %v775 = vpop.f32.mrb[0].mxu0
  %v776 = vadd.f32 %v707, %v775
  %v777 = vpop.f32.mrb[0].mxu0
  %778 = vdwg.mxu0
  %779 = vst [vmem:[%s15] sm:$0xff] %v776
  // Predicated region
  $region62: #{dqn7l_forward.1} parent=0 // pred_check
    _
  $region63: #{dqn7l_forward.1} parent=0 // pred_check_branch
    %781 = sbr.rel (0) target = $region65
  $region64: #{dqn7l_forward.1} parent=0 // pred_region
    _
  $region65: #{dqn7l_forward.1} parent=0 // pred_fallthru
    _
  // Predicated region
  $region66: #{dqn7l_forward.1} parent=0 // pred_check
    _
  $region67: #{dqn7l_forward.1} parent=0 // pred_check_branch
    %783 = sbr.rel (0) target = $region69
  $region68: #{dqn7l_forward.1} parent=0 // pred_region
    _
  $region69: #{dqn7l_forward.1} parent=0 // pred_fallthru
    _

</llo_original>
